<compile_context>
chip_gen: v5e
topology: v5e:2x2
jax: 0.10.0
libtpu: 0.0.40
codegen_flags: <defaults>
</compile_context>

<pallas_src>
import functools
import math
from typing import NamedTuple

import numpy as np

import jax
import jax.numpy as jnp
from jax.experimental import pallas as pl
from jax.experimental.pallas import tpu as pltpu


MB = 1024 * 1024


# ----------------------------------------------------------------------------- utils
def _round_up(x, m):
    return (x + m - 1) // m * m


def _cdiv(a, b):
    return -(-a // b)


@functools.lru_cache(maxsize=1)
def _vmem_cap_bytes():
    """Usable per-call VMEM budget (generation aware, with headroom)."""
    try:
        cap = int(pltpu.get_tpu_info().vmem_capacity_bytes)
    except Exception:
        cap = 0
    if cap <= 0:
        cap = 128 * MB
    try:
        kind = jax.devices()[0].device_kind.lower()
        if "v7" in kind:  # 64 MiB physical VMEM per TensorCore on v7x
            cap = min(cap, 64 * MB)
    except Exception:
        pass
    return max(32 * MB, min(cap * 3 // 4, 100 * MB))


def _buffered_kw(n):
    """{'pipeline_mode': pl.Buffered(n)} if supported by this JAX, else {} (safe)."""
    try:
        kw = {"pipeline_mode": pl.Buffered(n)}
        pl.BlockSpec((8, 128), lambda i, j: (0, 0), **kw)
        return kw
    except Exception:
        return {}


_BUF3_KW = _buffered_kw(3)


def get_upsampling_weight(in_channels, out_channels, kernel_size):
    """2D bilinear upsampling kernel (same as the PyTorch helper)."""
    factor = (kernel_size + 1) // 2
    if kernel_size % 2 == 1:
        center = factor - 1
    else:
        center = factor - 0.5
    og = np.ogrid[:kernel_size, :kernel_size]
    filt = (1 - abs(og[0] - center) / factor) * (1 - abs(og[1] - center) / factor)
    weight = np.zeros((in_channels, out_channels, kernel_size, kernel_size),
                      dtype=np.float64)
    weight[range(in_channels), range(out_channels), :, :] = filt
    return jnp.asarray(weight, dtype=jnp.float32)


# ----------------------------------------------------------------- weight preparation
def _prep_conv_weight(w):
    """(O, I, kh, kw) PyTorch conv weight -> (kh*kw*I, O) bf16 matmul weight, in the
    tap-major / channel-minor column order used by the im2col below."""
    O, I, kh, kw = w.shape
    return jnp.transpose(w, (2, 3, 1, 0)).reshape(kh * kw * I, O).astype(jnp.bfloat16)


def _prep_deconv_weight(w, stride):
    """(I, O, k, k) ConvTranspose2d weight with k == 2*stride -> matmul weight
    (2*2*I, s*s*O) for the direct (2x2 conv + depth-to-space) formulation.

    Wc[(p,q,o), i, di, dj] = w[i, o, p + s*(1-di), q + s*(1-dj)]."""
    I, O, kh, kw = w.shape
    s = stride
    assert kh == 2 * s and kw == 2 * s
    w_r = w.reshape(I, O, 2, s, 2, s)            # (i, o, t, p, u, q), tap row = s*t + p
    w_r = jnp.flip(w_r, axis=(2, 4))             # (i, o, di, p, dj, q)
    wc = jnp.transpose(w_r, (3, 5, 1, 0, 2, 4))  # (p, q, o, i, di, dj)
    wc = wc.reshape(s * s * O, I, 2, 2)
    return _prep_conv_weight(wc)


# --------------------------------------------------------------------- matmul planner
class _MMPlan(NamedTuple):
    TM: int
    Mp: int
    TK: int
    nk: int
    Kp: int
    TN: int
    Np: int


def _best_divisor(M, cap):
    """Largest multiple-of-8 divisor of M that is <= cap (0 if none)."""
    d = min(cap, M) // 8 * 8
    while d >= 8:
        if M % d == 0:
            return d
        d -= 8
    return 0


@functools.lru_cache(maxsize=None)
def _plan_matmul(M, K, N, out_bytes):
    """Tile plan for (M,K)@(K,N): lane-dense 128-multiple N tiles; a single
    full-extent K block up to 4608 (so the big im2col A never needs K padding) and
    ~3.5K-wide 128-aligned K tiles otherwise (fc6); M tiles sized from a
    generation-aware VMEM budget, preferring exact divisors of M so the im2col A does
    not need a padded HBM copy."""
    big_vmem = _vmem_cap_bytes() >= 64 * MB

    Np = _round_up(N, 128)
    TN = min(Np, 512)
    Np = _round_up(Np, TN)

    if _round_up(K, 128) <= 4608:
        TK, nk, Kp = K, 1, K
    else:
        Kp = _round_up(K, 128)
        nk = _cdiv(Kp, 4096)
        TK = _round_up(_cdiv(Kp, nk), 128)
        Kp = TK * nk

    budget = (16 if big_vmem else 10) * MB           # single-copy A + O block budget
    per_row = 2 * TK + out_bytes * TN + (4 * TN if nk > 1 else 0)
    cap = max(128, min(4096, budget // per_row // 8 * 8))

    best = _best_divisor(M, cap)
    if best >= 256:
        TM, Mp = best, M
        # keep >= 2 M tiles (v7x megacore) when it costs nothing
        if TM == M and M % 16 == 0 and M // 2 >= 512:
            TM = M // 2
    else:
        TM = min(cap, _round_up(M, 8))
        Mp = _round_up(M, TM)
    return _MMPlan(TM, Mp, TK, nk, Kp, TN, Np)


# --------------------------------------------------------------------- Pallas matmul
def _mm_bias_kernel(a_ref, b_ref, bias_ref, o_ref, acc_ref, *, relu):
    """Multi K-step matmul with f32 accumulator scratch; bias/ReLU in the epilogue."""
    @pl.when(pl.program_id(2) == 0)
    def _():
        acc_ref[...] = jnp.zeros_like(acc_ref)

    acc_ref[...] += jnp.dot(a_ref[...], b_ref[...],
                            preferred_element_type=jnp.float32)

    @pl.when(pl.program_id(2) == pl.num_programs(2) - 1)
    def _():
        r = acc_ref[...] + bias_ref[...]
        if relu:
            r = jnp.maximum(r, 0.0)
        o_ref[...] = r.astype(o_ref.dtype)


def _mm_bias_kernel_single(a_ref, b_ref, bias_ref, o_ref, *, relu):
    """Single K-step matmul: no accumulator scratch round-trip."""
    r = jnp.dot(a_ref[...], b_ref[...], preferred_element_type=jnp.float32)
    r = r + bias_ref[...]
    if relu:
        r = jnp.maximum(r, 0.0)
    o_ref[...] = r.astype(o_ref.dtype)


def matmul_bias(a, b, bias, relu=False, out_dtype=jnp.float32):
    """C = A @ B + bias, optionally ReLU'd.  a:(M,K) b:(K,N) bias:(N,).

    A / B are fed to the MXU as bf16 (f32 accumulation); the output dtype is
    configurable so backbone activations can be written back as bf16."""
    M, K = a.shape
    K2, N = b.shape
    assert K == K2
    a = a.astype(jnp.bfloat16)
    b = b.astype(jnp.bfloat16)
    bias = bias.astype(jnp.float32)
    out_bytes = jnp.dtype(out_dtype).itemsize

    TM, Mp, TK, nk, Kp, TN, Np = _plan_matmul(M, K, N, out_bytes)

    a_p = a if (Mp == M and Kp == K) else jnp.pad(a, ((0, Mp - M), (0, Kp - K)))
    b_p = b if (Kp == K and Np == N) else jnp.pad(b, ((0, Kp - K), (0, Np - N)))
    bias2 = bias.reshape(1, N)
    bias_p = bias2 if Np == N else jnp.pad(bias2, ((0, 0), (0, Np - N)))

    # deeper weight buffering for the pure weight-streaming layers (fc6 / fc7)
    n_bsteps = (Np // TN) * nk
    use_buf3 = bool(_BUF3_KW) and TM <= 64 and n_bsteps >= 3
    b_kw = _BUF3_KW if use_buf3 else {}

    a_blk = TM * TK * 2
    b_blk = TK * TN * 2
    o_blk = TM * TN * out_bytes
    acc_blk = TM * TN * 4 if nk > 1 else 0
    vmem = 2 * a_blk + (3 if use_buf3 else 2) * b_blk + 2 * o_blk + acc_blk + 8 * MB
    vmem = int(min(_vmem_cap_bytes(), max(32 * MB, vmem)))

    cparams = pltpu.CompilerParams(
        dimension_semantics=(("parallel", "parallel", "arbitrary") if nk > 1
                             else ("parallel", "parallel")),
        vmem_limit_bytes=vmem,
    )

    if nk == 1:
        out = pl.pallas_call(
            functools.partial(_mm_bias_kernel_single, relu=relu),
            out_shape=jax.ShapeDtypeStruct((Mp, Np), out_dtype),
            grid_spec=pltpu.PrefetchScalarGridSpec(
                num_scalar_prefetch=0,
                grid=(Mp // TM, Np // TN),
                in_specs=[
                    pl.BlockSpec((TM, TK), lambda i, j: (i, 0)),
                    pl.BlockSpec((TK, TN), lambda i, j: (0, j), **b_kw),
                    pl.BlockSpec((1, TN), lambda i, j: (0, j)),
                ],
                out_specs=pl.BlockSpec((TM, TN), lambda i, j: (i, j)),
            ),
            compiler_params=cparams,
        )(a_p, b_p, bias_p)
    else:
        out = pl.pallas_call(
            functools.partial(_mm_bias_kernel, relu=relu),
            out_shape=jax.ShapeDtypeStruct((Mp, Np), out_dtype),
            grid_spec=pltpu.PrefetchScalarGridSpec(
                num_scalar_prefetch=0,
                grid=(Mp // TM, Np // TN, nk),
                in_specs=[
                    pl.BlockSpec((TM, TK), lambda i, j, k: (i, k)),
                    pl.BlockSpec((TK, TN), lambda i, j, k: (k, j), **b_kw),
                    pl.BlockSpec((1, TN), lambda i, j, k: (0, j)),
                ],
                out_specs=pl.BlockSpec((TM, TN), lambda i, j, k: (i, j)),
                scratch_shapes=[pltpu.VMEM((TM, TN), jnp.float32)],
            ),
            compiler_params=cparams,
        )(a_p, b_p, bias_p)

    if Mp != M or Np != N:
        out = out[:M, :N]
    return out


# --------------------------------------------------------------------------- conv ops
def conv2d(x, wmat, b, padding=0, relu=False, out_dtype=jnp.bfloat16):
    """PyTorch-semantics Conv2d, stride 1, square kernel.
    x: NHWC; wmat: pre-reshaped (k*k*C, O) matmul weight; b: (O,)."""
    N, H, W, C = x.shape
    K, O = wmat.shape
    k = math.isqrt(K // C)
    assert k * k * C == K, (wmat.shape, C)
    x = x.astype(jnp.bfloat16)

    Ho = H + 2 * padding - k + 1
    Wo = W + 2 * padding - k + 1
    out_bytes = jnp.dtype(out_dtype).itemsize

    # A tiny amount of extra output-width padding can give the im2col row count a
    # large exact block divisor, letting the matmul tile M without a full padded HBM
    # copy of the (potentially ~100 MB) im2col matrix.
    extra = 0
    if k > 1:
        best_cost = None
        for e in range(0, 8):
            if e and e * 16 > Wo + e:
                break
            Mc = N * Ho * (Wo + e)
            p = _plan_matmul(Mc, K, O, out_bytes)
            pad_cost = 0 if p.Mp == Mc else 2 * Mc * K * 2
            cost = (pad_cost + e * N * Ho * K * 2
                    + (p.Mp // p.TM) * (p.Np // p.TN) * p.nk * 300_000)
            if best_cost is None or cost < best_cost:
                best_cost, extra = cost, e
    Wo_c = Wo + extra

    if padding > 0 or extra > 0:
        x = jnp.pad(x, ((0, 0), (padding, padding), (padding, padding + extra), (0, 0)))

    # im2col (XLA glue), column order (tap_i, tap_j, c) matching _prep_conv_weight.
    # TODO(synk): fuse the k*k taps into the matmul grid (halo'd A blocks) to remove
    # this materialization entirely (~9x A-traffic for the 3x3 layers).
    if k == 1:
        patches = x.reshape(N * Ho * Wo_c, C)
    else:
        cols = [x[:, i:i + Ho, j:j + Wo_c, :] for i in range(k) for j in range(k)]
        patches = jnp.concatenate(cols, axis=-1).reshape(N * Ho * Wo_c, K)

    y = matmul_bias(patches, wmat, b, relu=relu, out_dtype=out_dtype)
    y = y.reshape(N, Ho, Wo_c, O)
    if extra:
        y = y[:, :, :Wo, :]
    return y


def conv_transpose2d_direct(x, wm, s, O):
    """PyTorch ConvTranspose2d (no bias, padding=0) with kernel == 2*stride,
    as a 2x2 conv (pre-reshaped weight wm) + depth-to-space.  x: NHWC."""
    N, Hin, Win, I = x.shape
    y = conv2d(x, wm, jnp.zeros((s * s * O,), jnp.float32),
               padding=1, relu=False, out_dtype=jnp.float32)
    A, B = Hin + 1, Win + 1
    y = y.reshape(N, A, B, s, s, O)
    y = jnp.transpose(y, (0, 1, 3, 2, 4, 5)).reshape(N, s * A, s * B, O)
    return y


def _conv_transpose2d_ref(x, w, s):
    """Generic zero-insertion ConvTranspose2d (validation only). x: NHWC, w: (I,O,k,k)."""
    I, O, kh, kw = w.shape
    x_d = jax.lax.pad(
        x, jnp.array(0.0, dtype=x.dtype),
        ((0, 0, 0),
         (kh - 1, kh - 1, s - 1),
         (kw - 1, kw - 1, s - 1),
         (0, 0, 0)))
    w_conv = jnp.transpose(jnp.flip(w, axis=(2, 3)), (1, 0, 2, 3))   # (O, I, kh, kw)
    return conv2d(x_d, _prep_conv_weight(w_conv), jnp.zeros((O,), jnp.float32),
                  padding=0, relu=False, out_dtype=jnp.float32)


# --------------------------------------------------------------------- Pallas maxpool
def _maxpool_kernel(x_ref, o_ref):
    # x_ref block: (1, TH, 2, Wo, 2C)  (row pair on axis 2, column pair folded into
    # the lane dim);  o_ref block: (1, TH, Wo, C)
    C = o_ref.shape[-1]
    a = x_ref[0, :, 0, :, :C]
    b = x_ref[0, :, 0, :, C:]
    c = x_ref[0, :, 1, :, :C]
    d = x_ref[0, :, 1, :, C:]
    o_ref[0] = jnp.maximum(jnp.maximum(a, b), jnp.maximum(c, d))


def maxpool2x2_ceil(x):
    """MaxPool2d(kernel=2, stride=2, ceil_mode=True) on NHWC (any float dtype)."""
    N, H, W, C = x.shape
    Ho, Wo = _cdiv(H, 2), _cdiv(W, 2)
    itemsize = jnp.dtype(x.dtype).itemsize

    # tile output rows so the input block stays ~4 MiB
    row_bytes = 4 * Wo * C * itemsize
    TH = max(1, min(Ho, (4 * MB) // max(row_bytes, 1)))
    nh = _cdiv(Ho, TH)
    TH = _cdiv(Ho, nh)
    Hot = TH * nh

    Hp, Wp = 2 * Hot, 2 * Wo
    if (Hp, Wp) != (H, W):
        x = jnp.pad(x, ((0, 0), (0, Hp - H), (0, Wp - W), (0, 0)),
                    constant_values=-jnp.inf)
    # free, layout-preserving reshape: row pairs -> axis 2, column pairs -> lane halves
    x5 = x.reshape(N, Hot, 2, Wo, 2 * C)

    in_blk = TH * 2 * Wo * 2 * C * itemsize
    out_blk = TH * Wo * C * itemsize
    vmem = int(min(_vmem_cap_bytes(), max(32 * MB, 2 * (in_blk + out_blk) + 8 * MB)))

    out = pl.pallas_call(
        _maxpool_kernel,
        out_shape=jax.ShapeDtypeStruct((N, Hot, Wo, C), x.dtype),
        grid_spec=pltpu.PrefetchScalarGridSpec(
            num_scalar_prefetch=0,
            grid=(N, nh),
            in_specs=[pl.BlockSpec((1, TH, 2, Wo, 2 * C),
                                   lambda n, h: (n, h, 0, 0, 0))],
            out_specs=pl.BlockSpec((1, TH, Wo, C), lambda n, h: (n, h, 0, 0)),
        ),
        compiler_params=pltpu.CompilerParams(
            dimension_semantics=("parallel", "parallel"),
            vmem_limit_bytes=vmem,
        ),
    )(x5)
    return out[:, :Ho, :, :]


# ----------------------------------------------------------------------------- params
def init_fcn8s_params(key, label_nbr):
    conv_shapes = {
        'conv1_1': (64, 3, 3, 3),   'conv1_2': (64, 64, 3, 3),
        'conv2_1': (128, 64, 3, 3), 'conv2_2': (128, 128, 3, 3),
        'conv3_1': (256, 128, 3, 3), 'conv3_2': (256, 256, 3, 3), 'conv3_3': (256, 256, 3, 3),
        'conv4_1': (512, 256, 3, 3), 'conv4_2': (512, 512, 3, 3), 'conv4_3': (512, 512, 3, 3),
        'conv5_1': (512, 512, 3, 3), 'conv5_2': (512, 512, 3, 3), 'conv5_3': (512, 512, 3, 3),
        'fc6': (4096, 512, 7, 7),   'fc7': (4096, 4096, 1, 1),
        'score_fr': (label_nbr, 4096, 1, 1),
        'score_pool4': (label_nbr, 512, 1, 1),
        'score_pool3': (label_nbr, 256, 1, 1),
    }
    zero_init = ('score_fr', 'score_pool4', 'score_pool3')
    params = {}
    keys = jax.random.split(key, len(conv_shapes))
    for k_, (name, (o, i, kh, kw)) in zip(keys, conv_shapes.items()):
        if name in zero_init:
            w = jnp.zeros((o, i, kh, kw), jnp.float32)   # zero-init as in PyTorch __init__
        else:
            fan_in = i * kh * kw
            std = (2.0 / fan_in) ** 0.5
            w = jax.random.normal(k_, (o, i, kh, kw), jnp.float32) * jnp.float32(std)
        b = jnp.zeros((o,), jnp.float32)
        # stored pre-reshaped to matmul layout (k*k*I, O) in bf16: removes the
        # per-forward ~200 MB fc6 weight transpose and halves weight HBM traffic.
        params[name] = (_prep_conv_weight(w), b)
    # bilinear-initialized transposed convolutions (exactly as in __init__),
    # pre-reshaped for the direct (2x2 conv + depth-to-space) path.
    params['upscore2'] = _prep_deconv_weight(get_upsampling_weight(label_nbr, label_nbr, 4), 2)
    params['pool4_upscore2'] = _prep_deconv_weight(get_upsampling_weight(label_nbr, label_nbr, 4), 2)
    params['upscore8'] = _prep_deconv_weight(get_upsampling_weight(label_nbr, label_nbr, 16), 8)
    return params


# ---------------------------------------------------------------------------- forward
def fcn8s_forward(params, x_nchw):
    x = jnp.transpose(x_nchw, (0, 2, 3, 1))  # NCHW -> NHWC

    def conv(h, name, padding, relu=True, out_dtype=jnp.bfloat16):
        wm, b = params[name]
        return conv2d(h, wm, b, padding=padding, relu=relu, out_dtype=out_dtype)

    # conv blocks 1..5 (bf16 activations throughout the backbone)
    h = conv(x, 'conv1_1', 100)
    h = conv(h, 'conv1_2', 1)
    conv1 = maxpool2x2_ceil(h)

    h = conv(conv1, 'conv2_1', 1)
    h = conv(h, 'conv2_2', 1)
    conv2 = maxpool2x2_ceil(h)

    h = conv(conv2, 'conv3_1', 1)
    h = conv(h, 'conv3_2', 1)
    h = conv(h, 'conv3_3', 1)
    conv3 = maxpool2x2_ceil(h)

    h = conv(conv3, 'conv4_1', 1)
    h = conv(h, 'conv4_2', 1)
    h = conv(h, 'conv4_3', 1)
    conv4 = maxpool2x2_ceil(h)

    h = conv(conv4, 'conv5_1', 1)
    h = conv(h, 'conv5_2', 1)
    h = conv(h, 'conv5_3', 1)
    conv5 = maxpool2x2_ceil(h)

    # classifier head
    s = conv(conv5, 'fc6', 0)
    # TODO(synk): Dropout2d treated as identity (inference mode).
    s = conv(s, 'fc7', 0)
    score = conv(s, 'score_fr', 0, relu=False, out_dtype=jnp.float32)

    score4 = conv(conv4, 'score_pool4', 0, relu=False, out_dtype=jnp.float32)
    score3 = conv(conv3, 'score_pool3', 0, relu=False, out_dtype=jnp.float32)

    nl = score.shape[-1]
    # upscore2 + pool4 skip
    score = conv_transpose2d_direct(score, params['upscore2'], 2, nl)
    Hs, Ws = score.shape[1], score.shape[2]
    score = score + score4[:, 5:5 + Hs, 5:5 + Ws, :]
    # pool4_upscore2 + pool3 skip
    score = conv_transpose2d_direct(score, params['pool4_upscore2'], 2, nl)
    Hs, Ws = score.shape[1], score.shape[2]
    score = score + score3[:, 9:9 + Hs, 9:9 + Ws, :]
    # final x8 upsample + crop
    out = conv_transpose2d_direct(score, params['upscore8'], 8, nl)
    Hin, Win = x_nchw.shape[2], x_nchw.shape[3]
    out = out[:, 31:31 + Hin, 31:31 + Win, :]

    return jnp.transpose(out, (0, 3, 1, 2)).astype(jnp.float32)  # NHWC -> NCHW


# ------------------------------------------------------------------------------- main
if __name__ == "__main__":
    label_nbr = 21
    key = jax.random.PRNGKey(0)
    k_param, k_x, k_v1, k_v2 = jax.random.split(key, 4)

    # correctness check: direct transposed-conv path vs. zero-insertion reference,
    # with random (non-bilinear) weights so an indexing bug cannot hide behind zeros.
    xt = jax.random.normal(k_v1, (1, 5, 6, 3), jnp.float32)
    wt = jax.random.normal(k_v2, (3, 4, 4, 4), jnp.float32) * 0.5   # (I, O, k=4, k=4), s=2
    y_dir = conv_transpose2d_direct(xt, _prep_deconv_weight(wt, 2), 2, 4)
    y_ref = _conv_transpose2d_ref(xt, wt, 2)
    assert y_dir.shape == y_ref.shape, (y_dir.shape, y_ref.shape)
    err = float(jnp.max(jnp.abs(y_dir - y_ref)))
    assert err < 1e-2, f"transposed-conv direct path mismatch: {err}"

    params = init_fcn8s_params(k_param, label_nbr)
    x = jax.random.normal(k_x, (2, 3, 16, 16), jnp.float32)  # NCHW like PyTorch

    fwd = jax.jit(fcn8s_forward)
    out = jax.block_until_ready(fwd(params, x))

    assert out.shape == (2, label_nbr, 16, 16), out.shape
    assert bool(jnp.all(jnp.isfinite(out))), "non-finite values in output"
    print("KERNEL_OK")
</pallas_src>

<mosaic_0001>
module attributes {stable_mosaic.version = 11 : i64} {
  func.func @_mm_bias_kernel_single(%arg0: i32, %arg1: i32, %arg2: memref<48x12xbf16, #tpu.memory_space<vmem>>, %arg3: memref<12x128xbf16, #tpu.memory_space<vmem>>, %arg4: memref<1x128xf32, #tpu.memory_space<vmem>>, %arg5: memref<48x128xf32, #tpu.memory_space<vmem>>) attributes {dimension_semantics = [#tpu.dimension_semantics<parallel>, #tpu.dimension_semantics<parallel>], iteration_bounds = array<i64: 1, 1>, scalar_prefetch = 0 : i64, scratch_operands = 0 : i64, tpu.core_type = #tpu.core_type<tc>, window_params = [{transform_indices = @transform_0, window_bounds = array<i64: 48, 12>}, {transform_indices = @transform_1, window_bounds = array<i64: 12, 128>}, {transform_indices = @transform_2, window_bounds = array<i64: 1, 128>}, {transform_indices = @transform_3, window_bounds = array<i64: 48, 128>}]} {
    %c0 = arith.constant 0 : index
    %c0_0 = arith.constant 0 : index
    %0 = vector.load %arg2[%c0, %c0_0] : memref<48x12xbf16, #tpu.memory_space<vmem>>, vector<48x12xbf16>
    %c0_1 = arith.constant 0 : index
    %c0_2 = arith.constant 0 : index
    %1 = vector.load %arg3[%c0_1, %c0_2] : memref<12x128xbf16, #tpu.memory_space<vmem>>, vector<12x128xbf16>
    %cst = arith.constant dense<0.000000e+00> : vector<48x128xf32>
    %2 = tpu.matmul %0, %1, %cst {dimension_numbers = #tpu.dot_dimension_numbers<[1], [0], [0], [1], [0, 0, 1, 1], [], []>} : vector<48x12xbf16>, vector<12x128xbf16>, vector<48x128xf32> -> vector<48x128xf32>
    %c0_3 = arith.constant 0 : index
    %c0_4 = arith.constant 0 : index
    %3 = vector.load %arg4[%c0_3, %c0_4] : memref<1x128xf32, #tpu.memory_space<vmem>>, vector<1x128xf32>
    %4 = vector.broadcast %3 : vector<1x128xf32> to vector<48x128xf32>
    %5 = arith.addf %2, %4 : vector<48x128xf32>
    %c0_5 = arith.constant 0 : index
    %c0_6 = arith.constant 0 : index
    %6 = vector.load %arg5[%c0_5, %c0_6] : memref<48x128xf32, #tpu.memory_space<vmem>>, vector<48x128xf32>
    tpu.vector_store %arg5[%c0_5, %c0_6], %5 {strides = array<i32>} : memref<48x128xf32, #tpu.memory_space<vmem>>, vector<48x128xf32>,
    return
  }
  func.func @transform_0(%arg0: i32, %arg1: i32) -> (i32, i32) {
    %c0_i32 = arith.constant 0 : i32
    %c0_i32_0 = arith.constant 0 : i32
    return %arg0, %c0_i32 : i32, i32
  }
  func.func @transform_1(%arg0: i32, %arg1: i32) -> (i32, i32) {
    %c0_i32 = arith.constant 0 : i32
    %c0_i32_0 = arith.constant 0 : i32
    return %c0_i32, %arg1 : i32, i32
  }
  func.func @transform_2(%arg0: i32, %arg1: i32) -> (i32, i32) {
    %c0_i32 = arith.constant 0 : i32
    %c0_i32_0 = arith.constant 0 : i32
    return %c0_i32, %arg1 : i32, i32
  }
  func.func @transform_3(%arg0: i32, %arg1: i32) -> (i32, i32) {
    %c0_i32 = arith.constant 0 : i32
    return %arg0, %arg1 : i32, i32
  }
}

</mosaic_0001>

<llo_original>
// kernel: tpu_custom_call.1
$region0: #{tpu_custom_call.1}
  #allocation0 [shape = 'u32[]', space=smem, size = 0x4, offset = 0x4, fixed_abs, tag = 'smem constant byte address 0x4 - core index']
  #allocation1 [shape = 'u32[72,128]{1,0:T(1,128)}', space=vmem, size = 0x9000, scoped, tag = 'internal scratch']
  %s0 = inlined_call_operand.vmem [shape: bf16[48,12], index: 0, kind: input, shape index: {}]
  %s1 = inlined_call_operand.vmem [shape: bf16[12,128], index: 1, kind: input, shape index: {}]
  %s2 = inlined_call_operand.vmem [shape: f32[1,128], index: 2, kind: input, shape index: {}]
  %s3 = inlined_call_operand.hbm [shape: f32[48,128], index: 3, kind: output, shape index: {}]
  %s4 = sld [smem:[#allocation0]]
  $region22: #{tpu_custom_call.1} parent=0
    _
  %s6 = ssub.s32 1, %s4
  %s7 = scalar_select 0, %s6, %s4
  $region1: #{tpu_custom_call.1} parent=0
    #allocation2 [shape = 'u8[24576]{0}', space=vmem, size = 0x6000, scoped, tag = 'output window, operand 0, single buffered']
    #allocation3 [shape = 's32[1]{0}', space=sflag, size = 0x4, scoped, tag = 'scoped memory for tpu_custom_call.1']
    %8 = vsyncpa [#allocation3], 0
    // Predicated region
    $region2: #{tpu_custom_call.1} parent=1 // pred_check
      _
    $region3: #{tpu_custom_call.1} parent=1 // pred_check_branch
      %10 = sbr.rel (0) target = $region5
    $region4: #{tpu_custom_call.1} parent=1 // pred_region
      _
    $region5: #{tpu_custom_call.1} parent=1 // pred_fallthru
      _
    // Predicated region
    $region6: #{tpu_custom_call.1} parent=1 // pred_check
      _
    $region7: #{tpu_custom_call.1} parent=1 // pred_check_branch
      %12 = sbr.rel (0) target = $region9
    $region8: #{tpu_custom_call.1} parent=1 // pred_region
      _
    $region9: #{tpu_custom_call.1} parent=1 // pred_fallthru
      _
    // Predicated region
    $region10: #{tpu_custom_call.1} parent=1 // pred_check
      _
    $region11: #{tpu_custom_call.1} parent=1 // pred_check_branch
      %14 = sbr.rel (0) target = $region13
    $region12: #{tpu_custom_call.1} parent=1 // pred_region
      _
    $region13: #{tpu_custom_call.1} parent=1 // pred_fallthru
      _
    %v16 = vld [vmem:[%s0] sm:$0xf]
    %v17 = vld [vmem:[%s0 + $0x4] sm:$0xf]
    %v18 = vld [vmem:[%s0 + $0x8] sm:$0xf]
    %v19 = vld [vmem:[%s0 + $0xc] sm:$0xf]
    %v20 = vld [vmem:[%s0 + $0x10] sm:$0xf]
    %v21 = vld [vmem:[%s0 + $0x14] sm:$0xf]
    %v22 = vld [vmem:[%s1] sm:$0xf]
    %v23 = vld [vmem:[%s1 + $0x4] sm:$0x3]
    %v24 = vld [vmem:[%s2] sm:$0x1]
    %v26 = vperm.slane %v24, 0
    %v34 = vunpack.c.l.b16 %v16
    %v35 = vunpack.c.l.b16 %v17
    %v36 = vunpack.c.l.b16 %v18
    %v37 = vunpack.c.l.b16 %v19
    %v38 = vunpack.c.l.b16 %v20
    %v39 = vunpack.c.l.b16 %v21
    %v40 = vpack.c.b16 %v35, %v34
    %v41 = vpack.c.b16 %v37, %v36
    %v42 = vpack.c.b16 %v39, %v38
    %v45 = vunpack.c.l.b16 %v22
    %v46 = vunpack.c.l.b16 %v23
    %v47 = vpack.c.b16 %v46, %v45
    %vm48 = vcmask 97280
    %v50 = vsel %vm48, %v40, 0
    %v53 = vsel %vm48, %v41, 0
    %v56 = vsel %vm48, %v42, 0
    %vm58 = vcmask 1045504
    %v60 = vsel %vm58, %v47, 0
    %62 = vmatpush.bf16.msra.mxu0 0
    %63 = vmatpush.bf16.msra.mxu0 0
    %64 = vmatpush.bf16.msra.mxu0 0
    %65 = vmatpush.bf16.msra.mxu0 0
    %66 = vmatpush.bf16.msra.mxu0 0
    %67 = vmatpush.bf16.msra.mxu0 0
    %68 = vmatpush.bf16.msra.mxu0 0
    %69 = vmatpush.bf16.msra.mxu0 %v60
    %70 = vmatmul.bf16.gmra.mxu0 %v50
    %v71 = vpop.f32.mrf.mxu0
    %v72 = vadd.f32 %v26, %v71
    %v73 = vpop.f32.mrf.mxu0
    %v74 = vadd.f32 %v26, %v73
    %75 = vmatmul.bf16.gmra.mxu0 %v53
    %v76 = vpop.f32.mrf.mxu0
    %v77 = vadd.f32 %v26, %v76
    %v78 = vpop.f32.mrf.mxu0
    %v79 = vadd.f32 %v26, %v78
    %80 = vmatmul.bf16.gmra.mxu0 %v56
    %v81 = vpop.f32.mrf.mxu0
    %v82 = vadd.f32 %v26, %v81
    %v83 = vpop.f32.mrf.mxu0
    %v84 = vadd.f32 %v26, %v83
    %85 = vdwg.mxu0
    %86 = vst [vmem:[#allocation2] sm:$0xff] %v72
    %87 = vst [vmem:[#allocation2 + $0x8] sm:$0xff] %v74
    %88 = vst [vmem:[#allocation2 + $0x10] sm:$0xff] %v77
    %89 = vst [vmem:[#allocation2 + $0x18] sm:$0xff] %v79
    %90 = vst [vmem:[#allocation2 + $0x20] sm:$0xff] %v82
    %91 = vst [vmem:[#allocation2 + $0x28] sm:$0xff] %v84
    // Predicated region
    $region14: #{tpu_custom_call.1} parent=1 // pred_check
      _
    $region15: #{tpu_custom_call.1} parent=1 // pred_check_branch
      %93 = sbr.rel (0) target = $region17
    $region16: #{tpu_custom_call.1} parent=1 // pred_region
      %95 = vsyncadd [#allocation3], 0
      %s96 = sshll.u32 [#allocation2], 4
      %s97 = int_to_ptr.vmem [resolvable:$true] %s96
      %s98 = sshll.u32 %s3, 4
      %s99 = int_to_ptr.hbm [resolvable:$true] %s98
      %104 = dma.vmem_to_hbm [thread:$0]  %s97, 768, %s99, [#allocation3], 128, 128, 8
    $region17: #{tpu_custom_call.1} parent=1 // pred_fallthru
      _
    // Predicated region
    $region18: #{tpu_custom_call.1} parent=1 // pred_check
      _
    $region19: #{tpu_custom_call.1} parent=1 // pred_check_branch
      %106 = sbr.rel (0) target = $region21
    $region20: #{tpu_custom_call.1} parent=1 // pred_region
      %108 = dma.done [#allocation3], 768
    $region21: #{tpu_custom_call.1} parent=1 // pred_fallthru
      _
    %109 = vsyncpa [#allocation3], 1

</llo_original>
